<compile_context>
chip_gen: v5e
topology: v5e:2x2
jax: 0.10.0
libtpu: 0.0.40
codegen_flags: <defaults>
</compile_context>

<pallas_src>
import jax
import jax.numpy as jnp
from jax.experimental import pallas as pl
from jax.experimental.pallas import tpu as pltpu


def _se_kernel(x_ref, w1t_ref, w2t_ref, out_ref):
    # x_ref/out_ref: (Bb, C, HW)  (x dtype, possibly bf16)
    # w1t_ref: (C, r) f32, pre-scaled by 1/HW     w2t_ref: (r, C) f32
    x = x_ref[...].astype(jnp.float32)                        # (Bb, C, HW) f32 math
    pooled = jnp.sum(x, axis=-1)                              # (Bb, C); mean folded into w1t
    h = jnp.maximum(
        jnp.dot(pooled, w1t_ref[...],
                preferred_element_type=jnp.float32), 0.0)     # (Bb, r)  squeeze + ReLU
    s = jax.nn.sigmoid(
        jnp.dot(h, w2t_ref[...],
                preferred_element_type=jnp.float32))          # (Bb, C)  excite + sigmoid
    out_ref[...] = (x * s[:, :, None]).astype(out_ref.dtype)  # broadcast over HW lanes


def _tensorcores_per_chip():
    # Soft heuristic (perf-only): v7x has 2 TensorCores per chip, v5e/v6e have 1.
    try:
        kind = jax.devices()[0].device_kind.lower()
    except Exception:
        return 1
    return 2 if "v7" in kind else 1


def _pick_block_batch(B, C, HW, dtype):
    """Largest batch tile that (a) fits a v7x-safe VMEM budget, (b) leaves one
    grid step per TensorCore, (c) evenly divides B (no ragged block)."""
    itemsize = jnp.dtype(dtype).itemsize
    # in tile + out tile, each double-buffered by the auto-pipeline.
    per_batch_bytes = 2 * 2 * C * HW * itemsize
    budget = 24 << 20  # stay well under the 32 MiB scoped default (v7x: 64 MiB physical)
    vmem_cap = max(1, budget // max(1, per_batch_bytes))
    n_tc = _tensorcores_per_chip()
    per_core = max(1, B // n_tc) if n_tc > 1 else B
    bb = max(1, min(B, vmem_cap, per_core))
    while B % bb != 0:   # keep every block full
        bb -= 1
    return bb


def se_layer(x_nchw, w1, w2, *, block_batch=None):
    """SELayer.forward.

    x_nchw: (B, C, H, W) any float dtype (output matches this dtype).
    w1: (C//r, C) and w2: (C, C//r) in PyTorch nn.Linear layout (bias=False).
    """
    B, C, H, W = x_nchw.shape
    r = w1.shape[0]
    HW = H * W
    x = x_nchw.reshape(B, C, HW)  # HW on the lane axis; 256 = 2*128 here (lane-dense)

    # Tiny weights: pre-transpose once, keep f32, fold the 1/HW pool scale into w1.
    w1t = (w1.T.astype(jnp.float32)) * (1.0 / HW)   # (C, r)
    w2t = w2.T.astype(jnp.float32)                  # (r, C)

    Bb = _pick_block_batch(B, C, HW, x.dtype) if block_batch is None else block_batch
    grid = (pl.cdiv(B, Bb),)

    out = pl.pallas_call(
        _se_kernel,
        out_shape=jax.ShapeDtypeStruct((B, C, HW), x.dtype),
        grid=grid,
        in_specs=[
            pl.BlockSpec((Bb, C, HW), lambda b: (b, 0, 0)),
            pl.BlockSpec((C, r), lambda b: (0, 0)),
            pl.BlockSpec((r, C), lambda b: (0, 0)),
        ],
        out_specs=pl.BlockSpec((Bb, C, HW), lambda b: (b, 0, 0)),
        compiler_params=pltpu.CompilerParams(
            dimension_semantics=("parallel",)),
    )(x, w1t, w2t)
    return out.reshape(B, C, H, W)


def _se_reference(x, w1, w2):
    # Pure-JAX f32 reference mirroring the PyTorch module.
    xf = x.astype(jnp.float32)
    y = jnp.mean(xf, axis=(2, 3))                    # (B, C)
    y = jnp.maximum(y @ w1.T, 0.0)                   # (B, r)
    y = jax.nn.sigmoid(y @ w2.T)                     # (B, C)
    return xf * y[:, :, None, None]


if __name__ == "__main__":
    key = jax.random.PRNGKey(0)
    kx, k1, k2 = jax.random.split(key, 3)

    B, C, H, W = 2, 64, 16, 16          # channels=64, reduction=16 -> r=4
    reduction = 16
    r = C // reduction

    x_f32 = jax.random.normal(kx, (B, C, H, W), jnp.float32)
    # PyTorch nn.Linear weight layout: (out_features, in_features), bias=False.
    w1 = 0.2 * jax.random.normal(k1, (r, C), jnp.float32)
    w2 = 0.2 * jax.random.normal(k2, (C, r), jnp.float32)

    se_jit = jax.jit(se_layer)

    # f32 path: tight check against the reference.
    out_f32 = jax.block_until_ready(se_jit(x_f32, w1, w2))
    assert out_f32.shape == (B, C, H, W), out_f32.shape
    assert out_f32.dtype == jnp.float32
    assert bool(jnp.all(jnp.isfinite(out_f32)))
    ref_f32 = _se_reference(x_f32, w1, w2)
    assert bool(jnp.allclose(out_f32, ref_f32, atol=1e-5, rtol=1e-5))

    # bf16 feature-map I/O path (halved HBM traffic): looser storage-error tolerance.
    x_bf16 = x_f32.astype(jnp.bfloat16)
    out_bf16 = jax.block_until_ready(se_jit(x_bf16, w1, w2))
    assert out_bf16.dtype == jnp.bfloat16
    assert bool(jnp.all(jnp.isfinite(out_bf16.astype(jnp.float32))))
    ref_bf16 = _se_reference(x_bf16, w1, w2)
    assert bool(jnp.allclose(out_bf16.astype(jnp.float32), ref_bf16,
                             atol=5e-2, rtol=5e-2))

    print("KERNEL_OK")
</pallas_src>

<mosaic_0001>
module attributes {stable_mosaic.version = 11 : i64} {
  func.func @_se_kernel(%arg0: i32, %arg1: memref<2x64x256xf32, #tpu.memory_space<vmem>>, %arg2: memref<64x4xf32, #tpu.memory_space<vmem>>, %arg3: memref<4x64xf32, #tpu.memory_space<vmem>>, %arg4: memref<2x64x256xf32, #tpu.memory_space<vmem>>) attributes {dimension_semantics = [#tpu.dimension_semantics<parallel>], iteration_bounds = array<i64: 1>, scalar_prefetch = 0 : i64, scratch_operands = 0 : i64, tpu.core_type = #tpu.core_type<tc>, window_params = [{transform_indices = @transform_0, window_bounds = array<i64: 2, 64, 256>}, {pipeline_mode = #tpu.pipeline_mode<synchronous>, transform_indices = @transform_1, window_bounds = array<i64: 64, 4>}, {pipeline_mode = #tpu.pipeline_mode<synchronous>, transform_indices = @transform_2, window_bounds = array<i64: 4, 64>}, {transform_indices = @transform_3, window_bounds = array<i64: 2, 64, 256>}]} {
    %c0 = arith.constant 0 : index
    %c0_0 = arith.constant 0 : index
    %c0_1 = arith.constant 0 : index
    %0 = vector.load %arg1[%c0, %c0_0, %c0_1] : memref<2x64x256xf32, #tpu.memory_space<vmem>>, vector<2x64x256xf32>
    %cst = arith.constant dense<0.000000e+00> : vector<2x64xf32>
    %1 = vector.multi_reduction <add>, %0, %cst [2] : vector<2x64x256xf32> to vector<2x64xf32>
    %c0_2 = arith.constant 0 : index
    %c0_3 = arith.constant 0 : index
    %2 = vector.load %arg2[%c0_2, %c0_3] : memref<64x4xf32, #tpu.memory_space<vmem>>, vector<64x4xf32>
    %cst_4 = arith.constant dense<0.000000e+00> : vector<2x4xf32>
    %3 = tpu.matmul %1, %2, %cst_4 {dimension_numbers = #tpu.dot_dimension_numbers<[1], [0], [0], [1], [0, 0, 1, 1], [], []>} : vector<2x64xf32>, vector<64x4xf32>, vector<2x4xf32> -> vector<2x4xf32>
    %cst_5 = arith.constant 0.000000e+00 : f32
    %4 = vector.broadcast %cst_5 : f32 to vector<2x4xf32>
    %5 = arith.maximumf %3, %4 : vector<2x4xf32>
    %c0_6 = arith.constant 0 : index
    %c0_7 = arith.constant 0 : index
    %6 = vector.load %arg3[%c0_6, %c0_7] : memref<4x64xf32, #tpu.memory_space<vmem>>, vector<4x64xf32>
    %cst_8 = arith.constant dense<0.000000e+00> : vector<2x64xf32>
    %7 = tpu.matmul %5, %6, %cst_8 {dimension_numbers = #tpu.dot_dimension_numbers<[1], [0], [0], [1], [0, 0, 1, 1], [], []>} : vector<2x4xf32>, vector<4x64xf32>, vector<2x64xf32> -> vector<2x64xf32>
    %8 = arith.negf %7 : vector<2x64xf32>
    %9 = math.exp %8 : vector<2x64xf32>
    %cst_9 = arith.constant 1.000000e+00 : f32
    %10 = vector.broadcast %cst_9 : f32 to vector<2x64xf32>
    %11 = arith.addf %10, %9 : vector<2x64xf32>
    %12 = arith.divf %10, %11 : vector<2x64xf32>
    %13 = vector.shape_cast %12 : vector<2x64xf32> to vector<2x64x1xf32>
    %14 = vector.broadcast %13 : vector<2x64x1xf32> to vector<2x64x256xf32>
    %15 = arith.mulf %0, %14 : vector<2x64x256xf32>
    %c0_10 = arith.constant 0 : index
    %c0_11 = arith.constant 0 : index
    %c0_12 = arith.constant 0 : index
    %16 = vector.load %arg4[%c0_10, %c0_11, %c0_12] : memref<2x64x256xf32, #tpu.memory_space<vmem>>, vector<2x64x256xf32>
    tpu.vector_store %arg4[%c0_10, %c0_11, %c0_12], %15 {strides = array<i32>} : memref<2x64x256xf32, #tpu.memory_space<vmem>>, vector<2x64x256xf32>,
    return
  }
  func.func @transform_0(%arg0: i32) -> (i32, i32, i32) {
    %c0_i32 = arith.constant 0 : i32
    %c0_i32_0 = arith.constant 0 : i32
    %c0_i32_1 = arith.constant 0 : i32
    return %arg0, %c0_i32, %c0_i32_0 : i32, i32, i32
  }
  func.func @transform_1(%arg0: i32) -> (i32, i32) {
    %c0_i32 = arith.constant 0 : i32
    %c0_i32_0 = arith.constant 0 : i32
    %c0_i32_1 = arith.constant 0 : i32
    return %c0_i32, %c0_i32_0 : i32, i32
  }
  func.func @transform_2(%arg0: i32) -> (i32, i32) {
    %c0_i32 = arith.constant 0 : i32
    %c0_i32_0 = arith.constant 0 : i32
    %c0_i32_1 = arith.constant 0 : i32
    return %c0_i32, %c0_i32_0 : i32, i32
  }
  func.func @transform_3(%arg0: i32) -> (i32, i32, i32) {
    %c0_i32 = arith.constant 0 : i32
    %c0_i32_0 = arith.constant 0 : i32
    %c0_i32_1 = arith.constant 0 : i32
    return %arg0, %c0_i32, %c0_i32_0 : i32, i32, i32
  }
}

</mosaic_0001>

<llo_original>
// kernel: se_layer.1
$region0: #{se_layer.1}
  #allocation0 [shape = 'u32[]', space=smem, size = 0x4, offset = 0x4, fixed_abs, tag = 'smem constant byte address 0x4 - core index']
  #allocation1 [shape = 'u32[72,128]{1,0:T(1,128)}', space=vmem, size = 0x9000, scoped, tag = 'internal scratch']
  %s0 = inlined_call_operand.vmem [shape: f32[2,64,256], index: 0, kind: input, shape index: {}]
  %s1 = inlined_call_operand.vmem [shape: f32[64,4], index: 1, kind: input, shape index: {}]
  %s2 = inlined_call_operand.vmem [shape: f32[4,64], index: 2, kind: input, shape index: {}]
  %s3 = inlined_call_operand.vmem [shape: f32[2,64,256], index: 3, kind: output, shape index: {}]
  %s4 = sld [smem:[#allocation0]]
  $region22: #{se_layer.1} parent=0
    _
  %s6 = ssub.s32 1, %s4
  %s7 = scalar_select 0, %s6, %s4
  // Predicated region
  $region2: #{se_layer.1} parent=0 // pred_check
    _
  $region3: #{se_layer.1} parent=0 // pred_check_branch
    %9 = sbr.rel (0) target = $region5
  $region4: #{se_layer.1} parent=0 // pred_region
    _
  $region5: #{se_layer.1} parent=0 // pred_fallthru
    _
  // Predicated region
  $region6: #{se_layer.1} parent=0 // pred_check
    _
  $region7: #{se_layer.1} parent=0 // pred_check_branch
    %11 = sbr.rel (0) target = $region9
  $region8: #{se_layer.1} parent=0 // pred_region
    _
  $region9: #{se_layer.1} parent=0 // pred_fallthru
    _
  // Predicated region
  $region10: #{se_layer.1} parent=0 // pred_check
    _
  $region11: #{se_layer.1} parent=0 // pred_check_branch
    %13 = sbr.rel (0) target = $region13
  $region12: #{se_layer.1} parent=0 // pred_region
    _
  $region13: #{se_layer.1} parent=0 // pred_fallthru
    _
  %v14 = vld [vmem:[%s0] sm:$0xff]
  %v15 = vld [vmem:[%s0 + $0x8] sm:$0xff]
  %v16 = vld [vmem:[%s0 + $0x10] sm:$0xff]
  %v17 = vld [vmem:[%s0 + $0x18] sm:$0xff]
  %v18 = vld [vmem:[%s0 + $0x20] sm:$0xff]
  %v19 = vld [vmem:[%s0 + $0x28] sm:$0xff]
  %v20 = vld [vmem:[%s0 + $0x30] sm:$0xff]
  %v21 = vld [vmem:[%s0 + $0x38] sm:$0xff]
  %v22 = vld [vmem:[%s0 + $0x40] sm:$0xff]
  %v23 = vld [vmem:[%s0 + $0x48] sm:$0xff]
  %v24 = vld [vmem:[%s0 + $0x50] sm:$0xff]
  %v25 = vld [vmem:[%s0 + $0x58] sm:$0xff]
  %v26 = vld [vmem:[%s0 + $0x60] sm:$0xff]
  %v27 = vld [vmem:[%s0 + $0x68] sm:$0xff]
  %v28 = vld [vmem:[%s0 + $0x70] sm:$0xff]
  %v29 = vld [vmem:[%s0 + $0x78] sm:$0xff]
  %v30 = vld [vmem:[%s0 + $0x80] sm:$0xff]
  %v31 = vld [vmem:[%s0 + $0x88] sm:$0xff]
  %v32 = vld [vmem:[%s0 + $0x90] sm:$0xff]
  %v33 = vld [vmem:[%s0 + $0x98] sm:$0xff]
  %v34 = vld [vmem:[%s0 + $0xa0] sm:$0xff]
  %v35 = vld [vmem:[%s0 + $0xa8] sm:$0xff]
  %v36 = vld [vmem:[%s0 + $0xb0] sm:$0xff]
  %v37 = vld [vmem:[%s0 + $0xb8] sm:$0xff]
  %v38 = vld [vmem:[%s0 + $0xc0] sm:$0xff]
  %v39 = vld [vmem:[%s0 + $0xc8] sm:$0xff]
  %v40 = vld [vmem:[%s0 + $0xd0] sm:$0xff]
  %v41 = vld [vmem:[%s0 + $0xd8] sm:$0xff]
  %v42 = vld [vmem:[%s0 + $0xe0] sm:$0xff]
  %v43 = vld [vmem:[%s0 + $0xe8] sm:$0xff]
  %v44 = vld [vmem:[%s0 + $0xf0] sm:$0xff]
  %v45 = vld [vmem:[%s0 + $0xf8] sm:$0xff]
  %v46 = vadd.f32 %v14, %v15
  %47 = vadd.xlane.f32.xlu0 %v46
  %v48 = vpop.xlane.xlu0 %47
  %v49 = vadd.f32 %v16, %v17
  %50 = vadd.xlane.f32.xlu0 %v49
  %v51 = vpop.xlane.xlu0 %50
  %v52 = vadd.f32 %v18, %v19
  %53 = vadd.xlane.f32.xlu0 %v52
  %v54 = vpop.xlane.xlu0 %53
  %v55 = vadd.f32 %v20, %v21
  %56 = vadd.xlane.f32.xlu0 %v55
  %v57 = vpop.xlane.xlu0 %56
  %v58 = vadd.f32 %v22, %v23
  %59 = vadd.xlane.f32.xlu0 %v58
  %v60 = vpop.xlane.xlu0 %59
  %v61 = vadd.f32 %v24, %v25
  %62 = vadd.xlane.f32.xlu0 %v61
  %v63 = vpop.xlane.xlu0 %62
  %v64 = vadd.f32 %v26, %v27
  %65 = vadd.xlane.f32.xlu0 %v64
  %v66 = vpop.xlane.xlu0 %65
  %v67 = vadd.f32 %v28, %v29
  %68 = vadd.xlane.f32.xlu0 %v67
  %v69 = vpop.xlane.xlu0 %68
  %v70 = vadd.f32 %v30, %v31
  %71 = vadd.xlane.f32.xlu0 %v70
  %v72 = vpop.xlane.xlu0 %71
  %v73 = vadd.f32 %v32, %v33
  %74 = vadd.xlane.f32.xlu0 %v73
  %v75 = vpop.xlane.xlu0 %74
  %v76 = vadd.f32 %v34, %v35
  %77 = vadd.xlane.f32.xlu0 %v76
  %v78 = vpop.xlane.xlu0 %77
  %v79 = vadd.f32 %v36, %v37
  %80 = vadd.xlane.f32.xlu0 %v79
  %v81 = vpop.xlane.xlu0 %80
  %v82 = vadd.f32 %v38, %v39
  %83 = vadd.xlane.f32.xlu0 %v82
  %v84 = vpop.xlane.xlu0 %83
  %v85 = vadd.f32 %v40, %v41
  %86 = vadd.xlane.f32.xlu0 %v85
  %v87 = vpop.xlane.xlu0 %86
  %v88 = vadd.f32 %v42, %v43
  %89 = vadd.xlane.f32.xlu0 %v88
  %v90 = vpop.xlane.xlu0 %89
  %v91 = vadd.f32 %v44, %v45
  %92 = vadd.xlane.f32.xlu0 %v91
  %v93 = vpop.xlane.xlu0 %92
  %v94 = vld [vmem:[%s1] sm:$0xff]
  %v95 = vld [vmem:[%s1 + $0x8] sm:$0xff]
  %v96 = vld [vmem:[%s1 + $0x10] sm:$0xff]
  %v97 = vld [vmem:[%s1 + $0x18] sm:$0xff]
  %v98 = vld [vmem:[%s1 + $0x20] sm:$0xff]
  %v99 = vld [vmem:[%s1 + $0x28] sm:$0xff]
  %v100 = vld [vmem:[%s1 + $0x30] sm:$0xff]
  %v101 = vld [vmem:[%s1 + $0x38] sm:$0xff]
  %v118 = vlaneseq
  %v119 = vand.u32 %v118, 127
  %v120 = vperm.slane %v48, %v119
  %v121 = vadd.s32 %v119, 4294967288
  %v122 = vperm.slane %v51, %v121
  %vm123 = vcmask 130112
  %v124 = vsel %vm123, %v122, %v120
  %v125 = vadd.s32 %v119, 4294967280
  %v126 = vperm.slane %v54, %v125
  %vm127 = vcmask 195712
  %v128 = vsel %vm127, %v126, %v124
  %v129 = vadd.s32 %v119, 4294967272
  %v130 = vperm.slane %v57, %v129
  %vm131 = vcmask 261312
  %v132 = vsel %vm131, %v130, %v128
  %v133 = vadd.s32 %v119, 4294967264
  %v134 = vperm.slane %v60, %v133
  %vm135 = vcmask 326912
  %v136 = vsel %vm135, %v134, %v132
  %v137 = vadd.s32 %v119, 4294967256
  %v138 = vperm.slane %v63, %v137
  %vm139 = vcmask 392512
  %v140 = vsel %vm139, %v138, %v136
  %v141 = vadd.s32 %v119, 4294967248
  %v142 = vperm.slane %v66, %v141
  %vm143 = vcmask 458112
  %v144 = vsel %vm143, %v142, %v140
  %v145 = vadd.s32 %v119, 4294967240
  %v146 = vperm.slane %v69, %v145
  %vm147 = vcmask 523712
  %v148 = vsel %vm147, %v146, %v144
  %v149 = vperm.slane %v72, %v119
  %v150 = vperm.slane %v75, %v121
  %v151 = vsel %vm123, %v150, %v149
  %v152 = vperm.slane %v78, %v125
  %v153 = vsel %vm127, %v152, %v151
  %v154 = vperm.slane %v81, %v129
  %v155 = vsel %vm131, %v154, %v153
  %v156 = vperm.slane %v84, %v133
  %v157 = vsel %vm135, %v156, %v155
  %v158 = vperm.slane %v87, %v137
  %v159 = vsel %vm139, %v158, %v157
  %v160 = vperm.slane %v90, %v141
  %v161 = vsel %vm143, %v160, %v159
  %v162 = vperm.slane %v93, %v145
  %v163 = vsel %vm147, %v162, %v161
  %vm164 = vcmask 1041409
  %v165 = vsel %vm164, %v163, %v148
  %vm166 = vcmask 523264
  %v167 = vsel %vm166, %v165, 0
  %169 = vmatpush.msra.mxu0 0.0
  %170 = vmatpush.msra.mxu0 0.0
  %171 = vmatpush.msra.mxu0 0.0
  %172 = vmatpush.msra.mxu0 0.0
  %173 = vmatpush.msra.mxu0 0.0
  %174 = vmatpush.msra.mxu0 0.0
  %175 = vmatpush.msra.mxu0 0.0
  %176 = vmatpush.msra.mxu0 0.0
  %177 = vmatpush.msra.mxu0 %v101
  %178 = vmatpush.msra.mxu0 %v100
  %179 = vmatpush.msra.mxu0 %v99
  %180 = vmatpush.msra.mxu0 %v98
  %181 = vmatpush.msra.mxu0 %v97
  %182 = vmatpush.msra.mxu0 %v96
  %183 = vmatpush.msra.mxu0 %v95
  %184 = vmatpush.msra.mxu0 %v94
  %185 = vmatmul.f32.gmra.mxu0 %v167
  %v186 = vpop.f32.mrf.mxu0
  %v187 = vadd.f32 0.0, %v186
  %188 = vdwg.mxu0
  %v189 = vmax.f32 %v187, 0.0
  %v190 = vld [vmem:[%s2] sm:$0xf]
  %vm191 = vcmask 31744
  %v193 = vsel %vm191, %v189, 0
  %vm195 = vcmask 1043456
  %v197 = vsel %vm195, %v190, 0
  %199 = vmatpush.msra.mxu0 0.0
  %200 = vmatpush.msra.mxu0 0.0
  %201 = vmatpush.msra.mxu0 0.0
  %202 = vmatpush.msra.mxu0 0.0
  %203 = vmatpush.msra.mxu0 0.0
  %204 = vmatpush.msra.mxu0 0.0
  %205 = vmatpush.msra.mxu0 0.0
  %206 = vmatpush.msra.mxu0 0.0
  %207 = vmatpush.msra.mxu0 0.0
  %208 = vmatpush.msra.mxu0 0.0
  %209 = vmatpush.msra.mxu0 0.0
  %210 = vmatpush.msra.mxu0 0.0
  %211 = vmatpush.msra.mxu0 0.0
  %212 = vmatpush.msra.mxu0 0.0
  %213 = vmatpush.msra.mxu0 0.0
  %214 = vmatpush.msra.mxu0 %v197
  %215 = vmatmul.f32.gmra.mxu0 %v193
  %v216 = vpop.f32.mrf.mxu0
  %v217 = vadd.f32 0.0, %v216
  %218 = vdwg.mxu0
  %v219 = vxor.u32 %v217, 2147483648
  %v220 = vmul.f32 %v219, 1.442695
  %v221 = vpow.pop %v220
  %v222 = vadd.f32 %v221, 1.0
  %v223 = vrcp.pop %v222
  %v224 = vmul.f32 %v222, %v223
  %v225 = vsub.f32 1.0, %v224
  %v226 = vmul.f32 %v223, %v225
  %v227 = vadd.f32 %v223, %v226
  %vm228 = vweird.f32 %v222
  %vm229 = vweird.f32 %v223
  %vm230 = vmor %vm228, %vm229
  %v231 = vsel %vm230, %v223, %v227
  %v232 = vand.u32 2147483647, %v222
  %vm233 = vcmp.eq.f32.partialorder %v232, 8.507059e+37
  %v234 = vand.u32 %v222, 2147483648
  %v235 = vor.u32 1.1754944e-38, %v234
  %v236 = vsel %vm233, %v235, %v231
  %v237 = vmul.f32 1.0, %v236
  %v238 = vperm.slane %v237, 0
  %v239 = vlaneseq
  %v240 = vshrl.u32 %v239, 7
  %242 = vset.pattern.permute.xlu0 %v240
  %243 = vperm.xlu0 %242, %v238
  %v244 = vpop.permute.xlu0 %243
  %v245 = vlaneseq
  %v246 = vshrl.u32 %v245, 7
  %v247 = vadd.s32 %v246, 8
  %248 = vset.pattern.permute.xlu0 %v247
  %249 = vperm.xlu0 %248, %v238
  %v250 = vpop.permute.xlu0 %249
  %v251 = vlaneseq
  %v252 = vshrl.u32 %v251, 7
  %v253 = vadd.s32 %v252, 16
  %254 = vset.pattern.permute.xlu0 %v253
  %255 = vperm.xlu0 %254, %v238
  %v256 = vpop.permute.xlu0 %255
  %v257 = vlaneseq
  %v258 = vshrl.u32 %v257, 7
  %v259 = vadd.s32 %v258, 24
  %260 = vset.pattern.permute.xlu0 %v259
  %261 = vperm.xlu0 %260, %v238
  %v262 = vpop.permute.xlu0 %261
  %v263 = vlaneseq
  %v264 = vshrl.u32 %v263, 7
  %v265 = vadd.s32 %v264, 32
  %266 = vset.pattern.permute.xlu0 %v265
  %267 = vperm.xlu0 %266, %v238
  %v268 = vpop.permute.xlu0 %267
  %v269 = vlaneseq
  %v270 = vshrl.u32 %v269, 7
  %v271 = vadd.s32 %v270, 40
  %272 = vset.pattern.permute.xlu0 %v271
  %273 = vperm.xlu0 %272, %v238
  %v274 = vpop.permute.xlu0 %273
  %v275 = vlaneseq
  %v276 = vshrl.u32 %v275, 7
  %v277 = vadd.s32 %v276, 48
  %278 = vset.pattern.permute.xlu0 %v277
  %279 = vperm.xlu0 %278, %v238
  %v280 = vpop.permute.xlu0 %279
  %v281 = vlaneseq
  %v282 = vshrl.u32 %v281, 7
  %v283 = vadd.s32 %v282, 56
  %284 = vset.pattern.permute.xlu0 %v283
  %285 = vperm.xlu0 %284, %v238
  %v286 = vpop.permute.xlu0 %285
  %v287 = vperm.slane %v237, 1
  %v288 = vlaneseq
  %v289 = vshrl.u32 %v288, 7
  %291 = vset.pattern.permute.xlu0 %v289
  %292 = vperm.xlu0 %291, %v287
  %v293 = vpop.permute.xlu0 %292
  %v294 = vlaneseq
  %v295 = vshrl.u32 %v294, 7
  %v296 = vadd.s32 %v295, 8
  %297 = vset.pattern.permute.xlu0 %v296
  %298 = vperm.xlu0 %297, %v287
  %v299 = vpop.permute.xlu0 %298
  %v300 = vlaneseq
  %v301 = vshrl.u32 %v300, 7
  %v302 = vadd.s32 %v301, 16
  %303 = vset.pattern.permute.xlu0 %v302
  %304 = vperm.xlu0 %303, %v287
  %v305 = vpop.permute.xlu0 %304
  %v306 = vlaneseq
  %v307 = vshrl.u32 %v306, 7
  %v308 = vadd.s32 %v307, 24
  %309 = vset.pattern.permute.xlu0 %v308
  %310 = vperm.xlu0 %309, %v287
  %v311 = vpop.permute.xlu0 %310
  %v312 = vlaneseq
  %v313 = vshrl.u32 %v312, 7
  %v314 = vadd.s32 %v313, 32
  %315 = vset.pattern.permute.xlu0 %v314
  %316 = vperm.xlu0 %315, %v287
  %v317 = vpop.permute.xlu0 %316
  %v318 = vlaneseq
  %v319 = vshrl.u32 %v318, 7
  %v320 = vadd.s32 %v319, 40
  %321 = vset.pattern.permute.xlu0 %v320
  %322 = vperm.xlu0 %321, %v287
  %v323 = vpop.permute.xlu0 %322
  %v324 = vlaneseq
  %v325 = vshrl.u32 %v324, 7
  %v326 = vadd.s32 %v325, 48
  %327 = vset.pattern.permute.xlu0 %v326
  %328 = vperm.xlu0 %327, %v287
  %v329 = vpop.permute.xlu0 %328
  %v330 = vlaneseq
  %v331 = vshrl.u32 %v330, 7
  %v332 = vadd.s32 %v331, 56
  %333 = vset.pattern.permute.xlu0 %v332
  %334 = vperm.xlu0 %333, %v287
  %v335 = vpop.permute.xlu0 %334
  %v336 = vmul.f32 %v14, %v244
  %v337 = vmul.f32 %v15, %v244
  %v338 = vmul.f32 %v16, %v250
  %v339 = vmul.f32 %v17, %v250
  %v340 = vmul.f32 %v18, %v256
  %v341 = vmul.f32 %v19, %v256
  %v342 = vmul.f32 %v20, %v262
  %v343 = vmul.f32 %v21, %v262
  %v344 = vmul.f32 %v22, %v268
  %v345 = vmul.f32 %v23, %v268
  %v346 = vmul.f32 %v24, %v274
  %v347 = vmul.f32 %v25, %v274
  %v348 = vmul.f32 %v26, %v280
  %v349 = vmul.f32 %v27, %v280
  %v350 = vmul.f32 %v28, %v286
  %v351 = vmul.f32 %v29, %v286
  %v352 = vmul.f32 %v30, %v293
  %v353 = vmul.f32 %v31, %v293
  %v354 = vmul.f32 %v32, %v299
  %v355 = vmul.f32 %v33, %v299
  %v356 = vmul.f32 %v34, %v305
  %v357 = vmul.f32 %v35, %v305
  %v358 = vmul.f32 %v36, %v311
  %v359 = vmul.f32 %v37, %v311
  %v360 = vmul.f32 %v38, %v317
  %v361 = vmul.f32 %v39, %v317
  %v362 = vmul.f32 %v40, %v323
  %v363 = vmul.f32 %v41, %v323
  %v364 = vmul.f32 %v42, %v329
  %v365 = vmul.f32 %v43, %v329
  %v366 = vmul.f32 %v44, %v335
  %v367 = vmul.f32 %v45, %v335
  %368 = vst [vmem:[%s3] sm:$0xff] %v336
  %369 = vst [vmem:[%s3 + $0x8] sm:$0xff] %v337
  %370 = vst [vmem:[%s3 + $0x10] sm:$0xff] %v338
  %371 = vst [vmem:[%s3 + $0x18] sm:$0xff] %v339
  %372 = vst [vmem:[%s3 + $0x20] sm:$0xff] %v340
  %373 = vst [vmem:[%s3 + $0x28] sm:$0xff] %v341
  %374 = vst [vmem:[%s3 + $0x30] sm:$0xff] %v342
  %375 = vst [vmem:[%s3 + $0x38] sm:$0xff] %v343
  %376 = vst [vmem:[%s3 + $0x40] sm:$0xff] %v344
  %377 = vst [vmem:[%s3 + $0x48] sm:$0xff] %v345
  %378 = vst [vmem:[%s3 + $0x50] sm:$0xff] %v346
  %379 = vst [vmem:[%s3 + $0x58] sm:$0xff] %v347
  %380 = vst [vmem:[%s3 + $0x60] sm:$0xff] %v348
  %381 = vst [vmem:[%s3 + $0x68] sm:$0xff] %v349
  %382 = vst [vmem:[%s3 + $0x70] sm:$0xff] %v350
  %383 = vst [vmem:[%s3 + $0x78] sm:$0xff] %v351
  %384 = vst [vmem:[%s3 + $0x80] sm:$0xff] %v352
  %385 = vst [vmem:[%s3 + $0x88] sm:$0xff] %v353
  %386 = vst [vmem:[%s3 + $0x90] sm:$0xff] %v354
  %387 = vst [vmem:[%s3 + $0x98] sm:$0xff] %v355
  %388 = vst [vmem:[%s3 + $0xa0] sm:$0xff] %v356
  %389 = vst [vmem:[%s3 + $0xa8] sm:$0xff] %v357
  %390 = vst [vmem:[%s3 + $0xb0] sm:$0xff] %v358
  %391 = vst [vmem:[%s3 + $0xb8] sm:$0xff] %v359
  %392 = vst [vmem:[%s3 + $0xc0] sm:$0xff] %v360
  %393 = vst [vmem:[%s3 + $0xc8] sm:$0xff] %v361
  %394 = vst [vmem:[%s3 + $0xd0] sm:$0xff] %v362
  %395 = vst [vmem:[%s3 + $0xd8] sm:$0xff] %v363
  %396 = vst [vmem:[%s3 + $0xe0] sm:$0xff] %v364
  %397 = vst [vmem:[%s3 + $0xe8] sm:$0xff] %v365
  %398 = vst [vmem:[%s3 + $0xf0] sm:$0xff] %v366
  %399 = vst [vmem:[%s3 + $0xf8] sm:$0xff] %v367
  // Predicated region
  $region14: #{se_layer.1} parent=0 // pred_check
    _
  $region15: #{se_layer.1} parent=0 // pred_check_branch
    %401 = sbr.rel (0) target = $region17
  $region16: #{se_layer.1} parent=0 // pred_region
    _
  $region17: #{se_layer.1} parent=0 // pred_fallthru
    _
  // Predicated region
  $region18: #{se_layer.1} parent=0 // pred_check
    _
  $region19: #{se_layer.1} parent=0 // pred_check_branch
    %403 = sbr.rel (0) target = $region21
  $region20: #{se_layer.1} parent=0 // pred_region
    _
  $region21: #{se_layer.1} parent=0 // pred_fallthru
    _

</llo_original>
